<compile_context>
chip_gen: v5e
topology: v5e:2x2
jax: 0.10.0
libtpu: 0.0.40
codegen_flags: <defaults>
</compile_context>

<pallas_src>
import jax
import jax.numpy as jnp
from jax import lax
from jax.experimental import pallas as pl
from jax.experimental.pallas import tpu as pltpu


def _vmem_budget_bytes():
    """~75% of physical VMEM (falls back to a conservative 64 MiB part)."""
    try:
        cap = pltpu.get_tpu_info().vmem_capacity_bytes
    except Exception:
        cap = 64 * 1024 * 1024
    return int(cap) * 3 // 4


def _pick_tq(n, c, c8, budget_bytes, cap=None):
    """Largest query tile that divides N, respects cap, and fits the budget."""
    cands = [t for t in (512, 256, 128) if t <= n and n % t == 0]
    if cap is not None:
        cands = [t for t in cands if t <= cap]
    # f32 bytes independent of TQ: x double-buffer (2*C*N) + K/V scratch.
    fixed = 4 * n * (2 * c + c8 + c)
    for t in cands:
        # attn out double-buffer (2*TQ*N) + ~3 live (TQ,N) temps + out dbuf.
        need = fixed + 4 * t * (5 * n + 2 * c)
        if need <= budget_bytes:
            return t
    if cands:
        return cands[-1]          # best effort: smallest legal 128-multiple
    return n                      # small N: single tile covering the axis


def _make_kernel(tq, n_qt):
    def kernel(x_ref, wq_ref, bq_ref, wk_ref, bk_ref, wv_ref, bv_ref,
               gamma_ref, out_ref, attn_ref, k_sc, v_sc):
        t = pl.program_id(1)
        xf = x_ref[0]                                    # (C, N), resident per b

        # K / V for the whole batch element: compute once, cache in VMEM.
        @pl.when(t == 0)
        def _():
            k_sc[...] = (jnp.dot(wk_ref[...], xf,
                                 preferred_element_type=jnp.float32)
                         + bk_ref[...])                  # (C8, N)
            v_sc[...] = (jnp.dot(wv_ref[...], xf,
                                 preferred_element_type=jnp.float32)
                         + bv_ref[...])                  # (C,  N)

        if n_qt == 1:
            xt = xf                                      # TQ == N
        else:
            start = pl.multiple_of(t * tq, tq)
            xt = x_ref[0, :, pl.ds(start, tq)]           # (C, TQ)

        q_ct = (jnp.dot(wq_ref[...], xt,
                        preferred_element_type=jnp.float32)
                + bq_ref[...])                           # (C8, TQ)

        # energy[i, j] = <q_i, k_j>: contract channel dim directly (no q.T).
        energy = lax.dot_general(q_ct, k_sc[...], (((0,), (0,)), ((), ())),
                                 preferred_element_type=jnp.float32)  # (TQ, N)

        # softmax over last axis, f32 throughout.
        m = jnp.max(energy, axis=-1, keepdims=True)
        e = jnp.exp(energy - m)
        s = jnp.sum(e, axis=-1, keepdims=True)
        r = pl.reciprocal(s, approx=True)
        r = r * (2.0 - s * r)            # one Newton step -> ~f32-exact
        attn = e * r                     # (TQ, N), lane-dense output block
        attn_ref[0] = attn.astype(attn_ref.dtype)

        # out[:, i] = sum_j attn[i, j] * v[:, j]  == V @ attn^T, contracted on N
        # (matches bmm(proj_value, attention^T)); no explicit attn transpose.
        # TODO(synk): matmul with unnormalized `e` and scale the (C,TQ) result
        # by r^T would shave TQ*N multiplies, but needs a (TQ,1)->(1,TQ)
        # relayout; skipped for lowering safety.
        o = lax.dot_general(v_sc[...], attn, (((1,), (1,)), ((), ())),
                            preferred_element_type=jnp.float32)       # (C, TQ)

        out_ref[0] = gamma_ref[0, 0] * o + xt

    return kernel


def self_attn_pallas(x, wq, bq, wk, bk, wv, bv, gamma, *, tq_cap=None,
                     attn_dtype=jnp.float32):
    """x: (B, C, W, H) float32.  Returns (out (B,C,W,H), attention (B,N,N))."""
    B, C, W, H = x.shape
    N = W * H
    C8 = wq.shape[0]

    budget = _vmem_budget_bytes()
    TQ = _pick_tq(N, C, C8, budget, cap=tq_cap)
    n_qt = N // TQ

    x_cn = x.reshape(B, C, N)            # pure reshape, no HBM transpose
    bq2 = bq.reshape(C8, 1)
    bk2 = bk.reshape(C8, 1)
    bv2 = bv.reshape(C, 1)
    gamma2 = gamma.reshape(1, 1)

    out_cn, attn = pl.pallas_call(
        _make_kernel(TQ, n_qt),
        out_shape=(
            jax.ShapeDtypeStruct((B, C, N), jnp.float32),
            jax.ShapeDtypeStruct((B, N, N), attn_dtype),
        ),
        grid_spec=pltpu.PrefetchScalarGridSpec(
            num_scalar_prefetch=0,
            grid=(B, n_qt),
            in_specs=[
                pl.BlockSpec((1, C, N), lambda b, t: (b, 0, 0)),     # x, resident per b
                pl.BlockSpec((C8, C), lambda b, t: (0, 0)),          # Wq
                pl.BlockSpec((C8, 1), lambda b, t: (0, 0)),          # bq
                pl.BlockSpec((C8, C), lambda b, t: (0, 0)),          # Wk
                pl.BlockSpec((C8, 1), lambda b, t: (0, 0)),          # bk
                pl.BlockSpec((C, C), lambda b, t: (0, 0)),           # Wv
                pl.BlockSpec((C, 1), lambda b, t: (0, 0)),           # bv
                pl.BlockSpec((1, 1), lambda b, t: (0, 0),
                             memory_space=pltpu.SMEM),               # gamma
            ],
            out_specs=[
                pl.BlockSpec((1, C, TQ), lambda b, t: (b, 0, t)),    # out
                pl.BlockSpec((1, TQ, N), lambda b, t: (b, t, 0)),    # attention
            ],
            scratch_shapes=[
                pltpu.VMEM((C8, N), jnp.float32),                    # K cache
                pltpu.VMEM((C, N), jnp.float32),                     # V cache
            ],
        ),
        compiler_params=pltpu.CompilerParams(
            # t axis must be "arbitrary": K/V scratch is initialized at t==0
            # and reused on later tiles of the same batch element.
            dimension_semantics=("parallel", "arbitrary"),
            vmem_limit_bytes=int(budget),
        ),
    )(x_cn, wq, bq2, wk, bk2, wv, bv2, gamma2)

    out = out_cn.reshape(B, C, W, H)
    return out, attn


def self_attn_ref(x, wq, bq, wk, bk, wv, bv, gamma):
    """Pure-JAX reference mirroring the PyTorch forward exactly."""
    B, C, W, H = x.shape
    N = W * H
    xf = x.reshape(B, C, N)                                          # (B, C, N)
    q = jnp.einsum('oc,bcn->bon', wq, xf) + bq[None, :, None]        # (B, C8, N)
    k = jnp.einsum('oc,bcn->bon', wk, xf) + bk[None, :, None]        # (B, C8, N)
    v = jnp.einsum('oc,bcn->bon', wv, xf) + bv[None, :, None]        # (B, C, N)
    energy = jnp.einsum('bci,bcj->bij', q, k)                        # (B, N, N)
    attention = jax.nn.softmax(energy, axis=-1)
    out = jnp.einsum('bcj,bij->bci', v, attention)                   # (B, C, N)
    out = out.reshape(B, C, W, H)
    out = gamma[0] * out + x
    return out, attention


def _run_case(B, C, W, H, seed, tq_cap):
    C8 = C // 8
    key = jax.random.PRNGKey(seed)
    k_x, k_wq, k_bq, k_wk, k_bk, k_wv, k_bv = jax.random.split(key, 7)

    x = jax.random.normal(k_x, (B, C, W, H), dtype=jnp.float32)
    # Conv2d(kernel_size=1) weights: (out, in, 1, 1) squeezed to (out, in).
    wq = 0.1 * jax.random.normal(k_wq, (C8, C), dtype=jnp.float32)
    bq = 0.1 * jax.random.normal(k_bq, (C8,), dtype=jnp.float32)
    wk = 0.1 * jax.random.normal(k_wk, (C8, C), dtype=jnp.float32)
    bk = 0.1 * jax.random.normal(k_bk, (C8,), dtype=jnp.float32)
    wv = 0.1 * jax.random.normal(k_wv, (C, C), dtype=jnp.float32)
    bv = 0.1 * jax.random.normal(k_bv, (C,), dtype=jnp.float32)
    # PyTorch inits gamma = 0 (output would trivially equal x); use a nonzero
    # deterministic value so the attention path is actually exercised.
    gamma = jnp.array([0.5], dtype=jnp.float32)

    out, attn = self_attn_pallas(x, wq, bq, wk, bk, wv, bv, gamma, tq_cap=tq_cap)
    jax.block_until_ready((out, attn))

    out_r, attn_r = self_attn_ref(x, wq, bq, wk, bk, wv, bv, gamma)
    assert jnp.allclose(out, out_r, atol=1e-4, rtol=1e-4), "output mismatch"
    assert jnp.allclose(attn, attn_r, atol=1e-5, rtol=1e-5), "attention mismatch"


if __name__ == "__main__":
    # Small case matching the module: in_dim=16 (C//8=2), 8x8 spatial (N=64),
    # single q-tile per batch element.
    _run_case(B=2, C=16, W=8, H=8, seed=0, tq_cap=None)
    # Multi-tile case: B=2, N=256 with TQ capped at 128 -> grid (2, 2);
    # exercises the query-tiling index maps, the K/V scratch cache across
    # q-tiles, and its re-initialization at the batch boundary.
    _run_case(B=2, C=16, W=16, H=16, seed=1, tq_cap=128)

    print("KERNEL_OK")
</pallas_src>

<mosaic_0001>
module attributes {stable_mosaic.version = 11 : i64} {
  func.func @kernel(%arg0: i32, %arg1: i32, %arg2: memref<1x16x64xf32, #tpu.memory_space<vmem>>, %arg3: memref<2x16xf32, #tpu.memory_space<vmem>>, %arg4: memref<2x1xf32, #tpu.memory_space<vmem>>, %arg5: memref<2x16xf32, #tpu.memory_space<vmem>>, %arg6: memref<2x1xf32, #tpu.memory_space<vmem>>, %arg7: memref<16x16xf32, #tpu.memory_space<vmem>>, %arg8: memref<16x1xf32, #tpu.memory_space<vmem>>, %arg9: memref<1x1xf32, #tpu.memory_space<smem>>, %arg10: memref<1x16x64xf32, #tpu.memory_space<vmem>>, %arg11: memref<1x64x64xf32, #tpu.memory_space<vmem>>, %arg12: memref<2x64xf32, #tpu.memory_space<vmem>>, %arg13: memref<16x64xf32, #tpu.memory_space<vmem>>) attributes {dimension_semantics = [#tpu.dimension_semantics<parallel>, #tpu.dimension_semantics<arbitrary>], iteration_bounds = array<i64: 2, 1>, scalar_prefetch = 0 : i64, scratch_operands = 2 : i64, tpu.core_type = #tpu.core_type<tc>, window_params = [{transform_indices = @transform_0, window_bounds = array<i64: 1, 16, 64>}, {pipeline_mode = #tpu.pipeline_mode<synchronous>, transform_indices = @transform_1, window_bounds = array<i64: 2, 16>}, {pipeline_mode = #tpu.pipeline_mode<synchronous>, transform_indices = @transform_2, window_bounds = array<i64: 2, 1>}, {pipeline_mode = #tpu.pipeline_mode<synchronous>, transform_indices = @transform_3, window_bounds = array<i64: 2, 16>}, {pipeline_mode = #tpu.pipeline_mode<synchronous>, transform_indices = @transform_4, window_bounds = array<i64: 2, 1>}, {pipeline_mode = #tpu.pipeline_mode<synchronous>, transform_indices = @transform_5, window_bounds = array<i64: 16, 16>}, {pipeline_mode = #tpu.pipeline_mode<synchronous>, transform_indices = @transform_6, window_bounds = array<i64: 16, 1>}, {transform_indices = @transform_7, window_bounds = array<i64: 1, 1>}, {transform_indices = @transform_8, window_bounds = array<i64: 1, 16, 64>}, {transform_indices = @transform_9, window_bounds = array<i64: 1, 64, 64>}]} {
    %c0 = arith.constant 0 : index
    %c0_0 = arith.constant 0 : index
    %c0_1 = arith.constant 0 : index
    %0 = vector.load %arg2[%c0, %c0_0, %c0_1] : memref<1x16x64xf32, #tpu.memory_space<vmem>>, vector<1x16x64xf32>
    %1 = vector.shape_cast %0 : vector<1x16x64xf32> to vector<16x64xf32>
    %c0_i32 = arith.constant 0 : i32
    %2 = arith.cmpi eq, %arg1, %c0_i32 : i32
    %3 = arith.extui %2 : i1 to i32
    %c0_i32_2 = arith.constant 0 : i32
    %4 = arith.cmpi ne, %3, %c0_i32_2 : i32
    scf.if %4 {
      %c0_24 = arith.constant 0 : index
      %c0_25 = arith.constant 0 : index
      %38 = vector.load %arg5[%c0_24, %c0_25] : memref<2x16xf32, #tpu.memory_space<vmem>>, vector<2x16xf32>
      %cst_26 = arith.constant dense<0.000000e+00> : vector<2x64xf32>
      %39 = tpu.matmul %38, %1, %cst_26 {dimension_numbers = #tpu.dot_dimension_numbers<[1], [0], [0], [1], [0, 0, 1, 1], [], []>} : vector<2x16xf32>, vector<16x64xf32>, vector<2x64xf32> -> vector<2x64xf32>
      %c0_27 = arith.constant 0 : index
      %c0_28 = arith.constant 0 : index
      %40 = vector.load %arg6[%c0_27, %c0_28] : memref<2x1xf32, #tpu.memory_space<vmem>>, vector<2x1xf32>
      %41 = vector.broadcast %40 : vector<2x1xf32> to vector<2x64xf32>
      %42 = arith.addf %39, %41 : vector<2x64xf32>
      %c0_29 = arith.constant 0 : index
      %c0_30 = arith.constant 0 : index
      %43 = vector.load %arg12[%c0_29, %c0_30] : memref<2x64xf32, #tpu.memory_space<vmem>>, vector<2x64xf32>
      tpu.vector_store %arg12[%c0_29, %c0_30], %42 {strides = array<i32>} : memref<2x64xf32, #tpu.memory_space<vmem>>, vector<2x64xf32>,
      %c0_31 = arith.constant 0 : index
      %c0_32 = arith.constant 0 : index
      %44 = vector.load %arg7[%c0_31, %c0_32] : memref<16x16xf32, #tpu.memory_space<vmem>>, vector<16x16xf32>
      %cst_33 = arith.constant dense<0.000000e+00> : vector<16x64xf32>
      %45 = tpu.matmul %44, %1, %cst_33 {dimension_numbers = #tpu.dot_dimension_numbers<[1], [0], [0], [1], [0, 0, 1, 1], [], []>} : vector<16x16xf32>, vector<16x64xf32>, vector<16x64xf32> -> vector<16x64xf32>
      %c0_34 = arith.constant 0 : index
      %c0_35 = arith.constant 0 : index
      %46 = vector.load %arg8[%c0_34, %c0_35] : memref<16x1xf32, #tpu.memory_space<vmem>>, vector<16x1xf32>
      %47 = vector.broadcast %46 : vector<16x1xf32> to vector<16x64xf32>
      %48 = arith.addf %45, %47 : vector<16x64xf32>
      %c0_36 = arith.constant 0 : index
      %c0_37 = arith.constant 0 : index
      %49 = vector.load %arg13[%c0_36, %c0_37] : memref<16x64xf32, #tpu.memory_space<vmem>>, vector<16x64xf32>
      tpu.vector_store %arg13[%c0_36, %c0_37], %48 {strides = array<i32>} : memref<16x64xf32, #tpu.memory_space<vmem>>, vector<16x64xf32>,
    } else {
    }
    %c0_3 = arith.constant 0 : index
    %c0_4 = arith.constant 0 : index
    %5 = vector.load %arg3[%c0_3, %c0_4] : memref<2x16xf32, #tpu.memory_space<vmem>>, vector<2x16xf32>
    %cst = arith.constant dense<0.000000e+00> : vector<2x64xf32>
    %6 = tpu.matmul %5, %1, %cst {dimension_numbers = #tpu.dot_dimension_numbers<[1], [0], [0], [1], [0, 0, 1, 1], [], []>} : vector<2x16xf32>, vector<16x64xf32>, vector<2x64xf32> -> vector<2x64xf32>
    %c0_5 = arith.constant 0 : index
    %c0_6 = arith.constant 0 : index
    %7 = vector.load %arg4[%c0_5, %c0_6] : memref<2x1xf32, #tpu.memory_space<vmem>>, vector<2x1xf32>
    %8 = vector.broadcast %7 : vector<2x1xf32> to vector<2x64xf32>
    %9 = arith.addf %6, %8 : vector<2x64xf32>
    %c0_7 = arith.constant 0 : index
    %c0_8 = arith.constant 0 : index
    %10 = vector.load %arg12[%c0_7, %c0_8] : memref<2x64xf32, #tpu.memory_space<vmem>>, vector<2x64xf32>
    %cst_9 = arith.constant dense<0.000000e+00> : vector<64x64xf32>
    %11 = tpu.matmul %9, %10, %cst_9 {dimension_numbers = #tpu.dot_dimension_numbers<[0], [0], [1], [1], [0, 1, 1, 1], [], []>} : vector<2x64xf32>, vector<2x64xf32>, vector<64x64xf32> -> vector<64x64xf32>
    %cst_10 = arith.constant dense<0xFF800000> : vector<64xf32>
    %12 = vector.multi_reduction <maximumf>, %11, %cst_10 [1] : vector<64x64xf32> to vector<64xf32>
    %13 = vector.shape_cast %12 : vector<64xf32> to vector<64x1xf32>
    %14 = vector.broadcast %13 : vector<64x1xf32> to vector<64x64xf32>
    %15 = arith.subf %11, %14 : vector<64x64xf32>
    %16 = math.exp %15 : vector<64x64xf32>
    %cst_11 = arith.constant dense<0.000000e+00> : vector<64xf32>
    %17 = vector.multi_reduction <add>, %16, %cst_11 [1] : vector<64x64xf32> to vector<64xf32>
    %18 = vector.shape_cast %17 : vector<64xf32> to vector<64x1xf32>
    %19 = tpu.reciprocal %18 {approx = true} : vector<64x1xf32> -> vector<64x1xf32>
    %20 = arith.mulf %18, %19 : vector<64x1xf32>
    %cst_12 = arith.constant 2.000000e+00 : f32
    %21 = vector.broadcast %cst_12 : f32 to vector<64x1xf32>
    %22 = arith.subf %21, %20 : vector<64x1xf32>
    %23 = arith.mulf %19, %22 : vector<64x1xf32>
    %24 = vector.broadcast %23 : vector<64x1xf32> to vector<64x64xf32>
    %25 = arith.mulf %16, %24 : vector<64x64xf32>
    %c0_13 = arith.constant 0 : index
    %c0_14 = arith.constant 0 : index
    %c0_15 = arith.constant 0 : index
    %26 = vector.load %arg11[%c0_13, %c0_14, %c0_15] : memref<1x64x64xf32, #tpu.memory_space<vmem>>, vector<1x64x64xf32>
    %27 = vector.shape_cast %26 : vector<1x64x64xf32> to vector<64x64xf32>
    %28 = vector.shape_cast %25 : vector<64x64xf32> to vector<1x64x64xf32>
    tpu.vector_store %arg11[%c0_13, %c0_14, %c0_15], %28 {strides = array<i32>} : memref<1x64x64xf32, #tpu.memory_space<vmem>>, vector<1x64x64xf32>,
    %c0_16 = arith.constant 0 : index
    %c0_17 = arith.constant 0 : index
    %29 = vector.load %arg13[%c0_16, %c0_17] : memref<16x64xf32, #tpu.memory_space<vmem>>, vector<16x64xf32>
    %cst_18 = arith.constant dense<0.000000e+00> : vector<16x64xf32>
    %30 = tpu.matmul %29, %25, %cst_18 {dimension_numbers = #tpu.dot_dimension_numbers<[1], [1], [0], [0], [0, 0, 1, 0], [], []>} : vector<16x64xf32>, vector<64x64xf32>, vector<16x64xf32> -> vector<16x64xf32>
    %c0_19 = arith.constant 0 : index
    %c0_20 = arith.constant 0 : index
    %31 = memref.load %arg9[%c0_19, %c0_20] : memref<1x1xf32, #tpu.memory_space<smem>>
    %32 = vector.broadcast %31 : f32 to vector<16x64xf32>
    %33 = arith.mulf %32, %30 : vector<16x64xf32>
    %34 = arith.addf %33, %1 : vector<16x64xf32>
    %c0_21 = arith.constant 0 : index
    %c0_22 = arith.constant 0 : index
    %c0_23 = arith.constant 0 : index
    %35 = vector.load %arg10[%c0_21, %c0_22, %c0_23] : memref<1x16x64xf32, #tpu.memory_space<vmem>>, vector<1x16x64xf32>
    %36 = vector.shape_cast %35 : vector<1x16x64xf32> to vector<16x64xf32>
    %37 = vector.shape_cast %34 : vector<16x64xf32> to vector<1x16x64xf32>
    tpu.vector_store %arg10[%c0_21, %c0_22, %c0_23], %37 {strides = array<i32>} : memref<1x16x64xf32, #tpu.memory_space<vmem>>, vector<1x16x64xf32>,
    return
  }
  func.func @transform_0(%arg0: i32, %arg1: i32) -> (i32, i32, i32) {
    %c0_i32 = arith.constant 0 : i32
    %c0_i32_0 = arith.constant 0 : i32
    %c0_i32_1 = arith.constant 0 : i32
    return %arg0, %c0_i32, %c0_i32_0 : i32, i32, i32
  }
  func.func @transform_1(%arg0: i32, %arg1: i32) -> (i32, i32) {
    %c0_i32 = arith.constant 0 : i32
    %c0_i32_0 = arith.constant 0 : i32
    %c0_i32_1 = arith.constant 0 : i32
    return %c0_i32, %c0_i32_0 : i32, i32
  }
  func.func @transform_2(%arg0: i32, %arg1: i32) -> (i32, i32) {
    %c0_i32 = arith.constant 0 : i32
    %c0_i32_0 = arith.constant 0 : i32
    %c0_i32_1 = arith.constant 0 : i32
    return %c0_i32, %c0_i32_0 : i32, i32
  }
  func.func @transform_3(%arg0: i32, %arg1: i32) -> (i32, i32) {
    %c0_i32 = arith.constant 0 : i32
    %c0_i32_0 = arith.constant 0 : i32
    %c0_i32_1 = arith.constant 0 : i32
    return %c0_i32, %c0_i32_0 : i32, i32
  }
  func.func @transform_4(%arg0: i32, %arg1: i32) -> (i32, i32) {
    %c0_i32 = arith.constant 0 : i32
    %c0_i32_0 = arith.constant 0 : i32
    %c0_i32_1 = arith.constant 0 : i32
    return %c0_i32, %c0_i32_0 : i32, i32
  }
  func.func @transform_5(%arg0: i32, %arg1: i32) -> (i32, i32) {
    %c0_i32 = arith.constant 0 : i32
    %c0_i32_0 = arith.constant 0 : i32
    %c0_i32_1 = arith.constant 0 : i32
    return %c0_i32, %c0_i32_0 : i32, i32
  }
  func.func @transform_6(%arg0: i32, %arg1: i32) -> (i32, i32) {
    %c0_i32 = arith.constant 0 : i32
    %c0_i32_0 = arith.constant 0 : i32
    %c0_i32_1 = arith.constant 0 : i32
    return %c0_i32, %c0_i32_0 : i32, i32
  }
  func.func @transform_7(%arg0: i32, %arg1: i32) -> (i32, i32) {
    %c0_i32 = arith.constant 0 : i32
    %c0_i32_0 = arith.constant 0 : i32
    %c0_i32_1 = arith.constant 0 : i32
    return %c0_i32, %c0_i32_0 : i32, i32
  }
  func.func @transform_8(%arg0: i32, %arg1: i32) -> (i32, i32, i32) {
    %c0_i32 = arith.constant 0 : i32
    %c0_i32_0 = arith.constant 0 : i32
    return %arg0, %c0_i32, %arg1 : i32, i32, i32
  }
  func.func @transform_9(%arg0: i32, %arg1: i32) -> (i32, i32, i32) {
    %c0_i32 = arith.constant 0 : i32
    %c0_i32_0 = arith.constant 0 : i32
    return %arg0, %arg1, %c0_i32 : i32, i32, i32
  }
}

</mosaic_0001>

<llo_original>
// kernel: tpu_custom_call.1
$region0: #{tpu_custom_call.1}
  #allocation0 [shape = 'u32[]', space=smem, size = 0x4, offset = 0x4, fixed_abs, tag = 'smem constant byte address 0x4 - core index']
  #allocation1 [shape = 'u32[72,128]{1,0:T(1,128)}', space=vmem, size = 0x9000, scoped, tag = 'internal scratch']
  #allocation2 [shape = 'f32[2,64]{1,0:T(2,128)}', space=vmem, size = 0x400, scoped, tag = 'scratch operand']
  #allocation3 [shape = 'f32[16,64]{1,0:T(8,128)}', space=vmem, size = 0x2000, scoped, tag = 'scratch operand']
  #allocation4 [shape = 'f32[1,1]{1,0:T(1,128)S(6)}', space=smem, size = 0x200, scoped, tag = 'scoped memory for tpu_custom_call.1']
  %s0 = inlined_call_operand.hbm [shape: f32[2,16,64], index: 0, kind: input, shape index: {}]
  %s1 = inlined_call_operand.vmem [shape: f32[2,16], index: 1, kind: input, shape index: {}]
  %s2 = inlined_call_operand.vmem [shape: f32[2,1], index: 2, kind: input, shape index: {}]
  %s3 = inlined_call_operand.vmem [shape: f32[2,16], index: 3, kind: input, shape index: {}]
  %s4 = inlined_call_operand.vmem [shape: f32[2,1], index: 4, kind: input, shape index: {}]
  %s5 = inlined_call_operand.vmem [shape: f32[16,16], index: 5, kind: input, shape index: {}]
  %s6 = inlined_call_operand.vmem [shape: f32[16,1], index: 6, kind: input, shape index: {}]
  %s7 = inlined_call_operand.<no memory space> [shape: f32[1,1], index: 7, kind: input, shape index: {}]
  %s8 = inlined_call_operand.hbm [shape: f32[2,16,64], index: 8, kind: output, shape index: {0}]
  %s9 = inlined_call_operand.hbm [shape: f32[2,64,64], index: 9, kind: output, shape index: {1}]
  %10 = xla_tuple %s8, %s9
  %s11 = sld [smem:[#allocation0]]
  $region81: #{tpu_custom_call.1} parent=0
    _
  %s13 = ssub.s32 1, %s11
  %s14 = scalar_select 0, %s13, %s11
  %15 = sst [smem:[#allocation4]] %s7
  $region1: #{tpu_custom_call.1} parent=0
    #allocation5 [shape = 'u8[16384]{0}', space=vmem, size = 0x4000, scoped, tag = 'input window, operand 0']
    #allocation6 [shape = 's32[2]{0}', space=sflag, size = 0x8, scoped, tag = 'scoped memory for tpu_custom_call.1']
    #allocation7 [shape = 's32[2]{0}', space=sflag, size = 0x8, scoped, tag = 'scoped memory for tpu_custom_call.1']
    #allocation8 [shape = 'u8[16384]{0}', space=vmem, size = 0x4000, scoped, tag = 'output window, operand 0']
    #allocation9 [shape = 'u8[65536]{0}', space=vmem, size = 0x10000, scoped, tag = 'output window, operand 1']
    #allocation10 [shape = 's32[2]{0}', space=sflag, size = 0x8, scoped, tag = 'scoped memory for tpu_custom_call.1']
    %16 = vsyncpa [#allocation6], 0
    %s17 = scalar_lea.sflag [#allocation6], 1
    %18 = vsyncpa %s17, 0
    %19 = vsyncpa [#allocation7], 0
    %s20 = scalar_lea.sflag [#allocation7], 1
    %21 = vsyncpa %s20, 0
    %22 = vsyncpa [#allocation10], 0
    %s23 = scalar_lea.sflag [#allocation10], 1
    %24 = vsyncpa %s23, 0
    loop: start=0, step=1, limit=4
    $region2: #{tpu_custom_call.1} parent=1 // loop_pre_header
      _
    $region3: #{tpu_custom_call.1} parent=1 // loop_header
      %s26 = sphi 0, %s30
      %p27 = scmp.ge.s32.totalorder %s26, 4
      %s33 = sphi 0, %s45
      %s34 = sphi 0, %s41
      %s35 = sphi 0, %s33
      %s36 = sphi 0, %s34
      %s37 = sphi 0, %s35
      %s38 = sphi 0, %s36
      %s48 = sphi 0, %s50
      %s51 = sphi 0, %s48
      %s52 = sphi 0, %s51
      %s68 = sphi 0, %s52
      %s72 = sphi 0, %s72
      %s74 = sphi 0, %s72
      %s75 = sphi 0, %s74
      %s89 = sphi 0, %s75
      %s93 = sphi 0, %s93
      %s95 = sphi 0, %s93
      %s96 = sphi 0, %s95
      %s110 = sphi 0, %s96
      %s114 = sphi 0, %s114
      %s116 = sphi 0, %s114
      %s117 = sphi 0, %s116
      %s131 = sphi 0, %s117
      %s135 = sphi 0, %s135
      %s137 = sphi 0, %s135
      %s138 = sphi 0, %s137
      %s152 = sphi 0, %s138
      %s156 = sphi 0, %s156
      %s158 = sphi 0, %s156
      %s159 = sphi 0, %s158
      %s173 = sphi 0, %s159
      %s177 = sphi 0, %s177
      %s179 = sphi 0, %s177
      %s180 = sphi 0, %s179
      %s194 = sphi 0, %s180
      %s198 = sphi 0, %s198
      %s200 = sphi 0, %s198
      %s201 = sphi 0, %s200
      %s215 = sphi 0, %s201
      %s223 = sphi 0, %s225
      %s226 = sphi 0, %s223
      %s227 = sphi 0, %s226
      %s243 = sphi 0, %s227
      %s251 = sphi 0, %s253
      %s254 = sphi 0, %s251
      %s255 = sphi 0, %s254
      %s271 = sphi 0, %s255
    $region4: #{tpu_custom_call.1} parent=1 // loop_header_branch
      %29 = sbr.rel (%p27) target = $region8
    $region5: #{tpu_custom_call.1} parent=1 // loop_body
      %s31 = ssub.s32 %s26, 1
      %s32 = ssub.s32 %s26, 2
      %s39 = sadd.s32 1, %s34
      %p40 = scmp.ge.s32.totalorder %s39, 1
      %s41 = scalar_select %p40, 0, %s39
      %s42 = sadd.s32 1, %s33
      %s43 = scalar_select %p40, %s42, %s33
      %p44 = scmp.ge.s32.totalorder %s43, 2
      %s45 = scalar_select %p44, 0, %s43
      %s46 = ssub.s32 %s33, %s45
      %p47 = scmp.eq.s32.totalorder %s46, 0
      %s49 = sadd.s32 %s48, 1
      %s50 = scalar_select %p47, %s48, %s49
      %p53 = pneg %p47
      %p54 = scmp.eq.s32.totalorder %s26, 1
      %p55 = por %p53, %p54
      %p56 = scmp.ne.s32.totalorder %s48, %s51
      %p57 = scmp.eq.s32.totalorder %s26, 0
      %p58 = por %p56, %p57
      %p59 = scmp.ne.s32.totalorder %s48, %s51
      %p60 = scmp.eq.s32.totalorder %s31, 1
      %p61 = por %p59, %p60
      %p62 = scmp.ne.s32.totalorder %s51, %s52
      %p63 = scmp.eq.s32.totalorder %s31, 0
      %p64 = por %p62, %p63
      %p65 = scmp.ne.s32.totalorder %s51, %s52
      %p66 = scmp.eq.s32.totalorder %s32, 1
      %p67 = por %p65, %p66
      %p69 = scmp.ne.s32.totalorder %s52, %s68
      %p70 = scmp.eq.s32.totalorder %s32, 0
      %p71 = por %p69, %p70
      %s73 = sadd.s32 %s72, 1
      %p76 = scmp.eq.s32.totalorder %s26, 1
      %p77 = scmp.ne.s32.totalorder %s72, %s74
      %p78 = scmp.eq.s32.totalorder %s26, 0
      %p79 = por %p77, %p78
      %p80 = scmp.ne.s32.totalorder %s72, %s74
      %p81 = scmp.eq.s32.totalorder %s31, 1
      %p82 = por %p80, %p81
      %p83 = scmp.ne.s32.totalorder %s74, %s75
      %p84 = scmp.eq.s32.totalorder %s31, 0
      %p85 = por %p83, %p84
      %p86 = scmp.ne.s32.totalorder %s74, %s75
      %p87 = scmp.eq.s32.totalorder %s32, 1
      %p88 = por %p86, %p87
      %p90 = scmp.ne.s32.totalorder %s75, %s89
      %p91 = scmp.eq.s32.totalorder %s32, 0
      %p92 = por %p90, %p91
      %s94 = sadd.s32 %s93, 1
      %p97 = scmp.eq.s32.totalorder %s26, 1
      %p98 = scmp.ne.s32.totalorder %s93, %s95
      %p99 = scmp.eq.s32.totalorder %s26, 0
      %p100 = por %p98, %p99
      %p101 = scmp.ne.s32.totalorder %s93, %s95
      %p102 = scmp.eq.s32.totalorder %s31, 1
      %p103 = por %p101, %p102
      %p104 = scmp.ne.s32.totalorder %s95, %s96
      %p105 = scmp.eq.s32.totalorder %s31, 0
      %p106 = por %p104, %p105
      %p107 = scmp.ne.s32.totalorder %s95, %s96
      %p108 = scmp.eq.s32.totalorder %s32, 1
      %p109 = por %p107, %p108
      %p111 = scmp.ne.s32.totalorder %s96, %s110
      %p112 = scmp.eq.s32.totalorder %s32, 0
      %p113 = por %p111, %p112
      %s115 = sadd.s32 %s114, 1
      %p118 = scmp.eq.s32.totalorder %s26, 1
      %p119 = scmp.ne.s32.totalorder %s114, %s116
      %p120 = scmp.eq.s32.totalorder %s26, 0
      %p121 = por %p119, %p120
      %p122 = scmp.ne.s32.totalorder %s114, %s116
      %p123 = scmp.eq.s32.totalorder %s31, 1
      %p124 = por %p122, %p123
      %p125 = scmp.ne.s32.totalorder %s116, %s117
      %p126 = scmp.eq.s32.totalorder %s31, 0
      %p127 = por %p125, %p126
      %p128 = scmp.ne.s32.totalorder %s116, %s117
      %p129 = scmp.eq.s32.totalorder %s32, 1
      %p130 = por %p128, %p129
      %p132 = scmp.ne.s32.totalorder %s117, %s131
      %p133 = scmp.eq.s32.totalorder %s32, 0
      %p134 = por %p132, %p133
      %s136 = sadd.s32 %s135, 1
      %p139 = scmp.eq.s32.totalorder %s26, 1
      %p140 = scmp.ne.s32.totalorder %s135, %s137
      %p141 = scmp.eq.s32.totalorder %s26, 0
      %p142 = por %p140, %p141
      %p143 = scmp.ne.s32.totalorder %s135, %s137
      %p144 = scmp.eq.s32.totalorder %s31, 1
      %p145 = por %p143, %p144
      %p146 = scmp.ne.s32.totalorder %s137, %s138
      %p147 = scmp.eq.s32.totalorder %s31, 0
      %p148 = por %p146, %p147
      %p149 = scmp.ne.s32.totalorder %s137, %s138
      %p150 = scmp.eq.s32.totalorder %s32, 1
      %p151 = por %p149, %p150
      %p153 = scmp.ne.s32.totalorder %s138, %s152
      %p154 = scmp.eq.s32.totalorder %s32, 0
      %p155 = por %p153, %p154
      %s157 = sadd.s32 %s156, 1
      %p160 = scmp.eq.s32.totalorder %s26, 1
      %p161 = scmp.ne.s32.totalorder %s156, %s158
      %p162 = scmp.eq.s32.totalorder %s26, 0
      %p163 = por %p161, %p162
      %p164 = scmp.ne.s32.totalorder %s156, %s158
      %p165 = scmp.eq.s32.totalorder %s31, 1
      %p166 = por %p164, %p165
      %p167 = scmp.ne.s32.totalorder %s158, %s159
      %p168 = scmp.eq.s32.totalorder %s31, 0
      %p169 = por %p167, %p168
      %p170 = scmp.ne.s32.totalorder %s158, %s159
      %p171 = scmp.eq.s32.totalorder %s32, 1
      %p172 = por %p170, %p171
      %p174 = scmp.ne.s32.totalorder %s159, %s173
      %p175 = scmp.eq.s32.totalorder %s32, 0
      %p176 = por %p174, %p175
      %s178 = sadd.s32 %s177, 1
      %p181 = scmp.eq.s32.totalorder %s26, 1
      %p182 = scmp.ne.s32.totalorder %s177, %s179
      %p183 = scmp.eq.s32.totalorder %s26, 0
      %p184 = por %p182, %p183
      %p185 = scmp.ne.s32.totalorder %s177, %s179
      %p186 = scmp.eq.s32.totalorder %s31, 1
      %p187 = por %p185, %p186
      %p188 = scmp.ne.s32.totalorder %s179, %s180
      %p189 = scmp.eq.s32.totalorder %s31, 0
      %p190 = por %p188, %p189
      %p191 = scmp.ne.s32.totalorder %s179, %s180
      %p192 = scmp.eq.s32.totalorder %s32, 1
      %p193 = por %p191, %p192
      %p195 = scmp.ne.s32.totalorder %s180, %s194
      %p196 = scmp.eq.s32.totalorder %s32, 0
      %p197 = por %p195, %p196
      %s199 = sadd.s32 %s198, 1
      %p202 = scmp.eq.s32.totalorder %s26, 1
      %p203 = scmp.ne.s32.totalorder %s198, %s200
      %p204 = scmp.eq.s32.totalorder %s26, 0
      %p205 = por %p203, %p204
      %p206 = scmp.ne.s32.totalorder %s198, %s200
      %p207 = scmp.eq.s32.totalorder %s31, 1
      %p208 = por %p206, %p207
      %p209 = scmp.ne.s32.totalorder %s200, %s201
      %p210 = scmp.eq.s32.totalorder %s31, 0
      %p211 = por %p209, %p210
      %p212 = scmp.ne.s32.totalorder %s200, %s201
      %p213 = scmp.eq.s32.totalorder %s32, 1
      %p214 = por %p212, %p213
      %p216 = scmp.ne.s32.totalorder %s201, %s215
      %p217 = scmp.eq.s32.totalorder %s32, 0
      %p218 = por %p216, %p217
      %s219 = ssub.s32 %s33, %s45
      %s220 = ssub.s32 %s34, %s41
      %s221 = sor.u32 %s219, %s220
      %p222 = scmp.eq.s32.totalorder %s221, 0
      %s224 = sadd.s32 %s223, 1
      %s225 = scalar_select %p222, %s223, %s224
      %p228 = pneg %p222
      %p229 = scmp.eq.s32.totalorder %s26, 1
      %p230 = por %p228, %p229
      %p231 = scmp.ne.s32.totalorder %s223, %s226
      %p232 = scmp.eq.s32.totalorder %s26, 0
      %p233 = por %p231, %p232
      %p234 = scmp.ne.s32.totalorder %s223, %s226
      %p235 = scmp.eq.s32.totalorder %s31, 1
      %p236 = por %p234, %p235
      %p237 = scmp.ne.s32.totalorder %s226, %s227
      %p238 = scmp.eq.s32.totalorder %s31, 0
      %p239 = por %p237, %p238
      %p240 = scmp.ne.s32.totalorder %s226, %s227
      %p241 = scmp.eq.s32.totalorder %s32, 1
      %p242 = por %p240, %p241
      %p244 = scmp.ne.s32.totalorder %s227, %s243
      %p245 = scmp.eq.s32.totalorder %s32, 0
      %p246 = por %p244, %p245
      %s247 = ssub.s32 %s33, %s45
      %s248 = ssub.s32 %s34, %s41
      %s249 = sor.u32 %s247, %s248
      %p250 = scmp.eq.s32.totalorder %s249, 0
      %s252 = sadd.s32 %s251, 1
      %s253 = scalar_select %p250, %s251, %s252
      %p256 = pneg %p250
      %p257 = scmp.eq.s32.totalorder %s26, 1
      %p258 = por %p256, %p257
      %p259 = scmp.ne.s32.totalorder %s251, %s254
      %p260 = scmp.eq.s32.totalorder %s26, 0
      %p261 = por %p259, %p260
      %p262 = scmp.ne.s32.totalorder %s251, %s254
      %p263 = scmp.eq.s32.totalorder %s31, 1
      %p264 = por %p262, %p263
      %p265 = scmp.ne.s32.totalorder %s254, %s255
      %p266 = scmp.eq.s32.totalorder %s31, 0
      %p267 = por %p265, %p266
      %p268 = scmp.ne.s32.totalorder %s254, %s255
      %p269 = scmp.eq.s32.totalorder %s32, 1
      %p270 = por %p268, %p269
      %p272 = scmp.ne.s32.totalorder %s255, %s271
      %p273 = scmp.eq.s32.totalorder %s32, 0
      %p274 = por %p272, %p273
      %p275 = scmp.le.s32.totalorder 1, %s26
      %p276 = scmp.lt.s32.totalorder %s26, 3
      %p277 = pnand %p275, %p276
      %p278 = pneg %p277
      // Predicated region
      $region9: #{tpu_custom_call.1} parent=5 // pred_check
        _
      $region10: #{tpu_custom_call.1} parent=5 // pred_check_branch
        %280 = sbr.rel (%p277) target = $region12
      $region11: #{tpu_custom_call.1} parent=5 // pred_region
        %s281 = ssub.s32 %s26, 1
        // Predicated region
        $region13: #{tpu_custom_call.1} parent=11 // pred_check
          %p282 = pneg %p85
        $region14: #{tpu_custom_call.1} parent=11 // pred_check_branch
          %284 = sbr.rel (%p282) target = $region16
        $region15: #{tpu_custom_call.1} parent=11 // pred_region
          _
        $region16: #{tpu_custom_call.1} parent=11 // pred_fallthru
          _
        // Predicated region
        $region17: #{tpu_custom_call.1} parent=11 // pred_check
          %p285 = pneg %p106
        $region18: #{tpu_custom_call.1} parent=11 // pred_check_branch
          %287 = sbr.rel (%p285) target = $region20
        $region19: #{tpu_custom_call.1} parent=11 // pred_region
          _
        $region20: #{tpu_custom_call.1} parent=11 // pred_fallthru
          _
        // Predicated region
        $region21: #{tpu_custom_call.1} parent=11 // pred_check
          %p288 = pneg %p127
        $region22: #{tpu_custom_call.1} parent=11 // pred_check_branch
          %290 = sbr.rel (%p288) target = $region24
        $region23: #{tpu_custom_call.1} parent=11 // pred_region
          _
        $region24: #{tpu_custom_call.1} parent=11 // pred_fallthru
          _
        // Predicated region
        $region25: #{tpu_custom_call.1} parent=11 // pred_check
          %p291 = pneg %p148
        $region26: #{tpu_custom_call.1} parent=11 // pred_check_branch
          %293 = sbr.rel (%p291) target = $region28
        $region27: #{tpu_custom_call.1} parent=11 // pred_region
          _
        $region28: #{tpu_custom_call.1} parent=11 // pred_fallthru
          _
        // Predicated region
        $region29: #{tpu_custom_call.1} parent=11 // pred_check
          %p294 = pneg %p169
        $region30: #{tpu_custom_call.1} parent=11 // pred_check_branch
          %296 = sbr.rel (%p294) target = $region32
        $region31: #{tpu_custom_call.1} parent=11 // pred_region
          _
        $region32: #{tpu_custom_call.1} parent=11 // pred_fallthru
          _
        // Predicated region
        $region33: #{tpu_custom_call.1} parent=11 // pred_check
          %p297 = pneg %p190
        $region34: #{tpu_custom_call.1} parent=11 // pred_check_branch
          %299 = sbr.rel (%p297) target = $region36
        $region35: #{tpu_custom_call.1} parent=11 // pred_region
          _
        $region36: #{tpu_custom_call.1} parent=11 // pred_fallthru
          _
        // Predicated region
        $region37: #{tpu_custom_call.1} parent=11 // pred_check
          %p300 = pneg %p211
        $region38: #{tpu_custom_call.1} parent=11 // pred_check_branch
          %302 = sbr.rel (%p300) target = $region40
        $region39: #{tpu_custom_call.1} parent=11 // pred_region
          _
        $region40: #{tpu_custom_call.1} parent=11 // pred_fallthru
          _
      $region12: #{tpu_custom_call.1} parent=5 // pred_fallthru
        _
      %p303 = scmp.lt.s32.totalorder %s26, 2
      // Predicated region
      $region41: #{tpu_custom_call.1} parent=5 // pred_check
        %p304 = pneg %p303
      $region42: #{tpu_custom_call.1} parent=5 // pred_check_branch
        %306 = sbr.rel (%p304) target = $region44
      $region43: #{tpu_custom_call.1} parent=5 // pred_region
        // Predicated region
        $region45: #{tpu_custom_call.1} parent=43 // pred_check
          %p307 = pneg %p58
        $region46: #{tpu_custom_call.1} parent=43 // pred_check_branch
          %309 = sbr.rel (%p307) target = $region48
        $region47: #{tpu_custom_call.1} parent=43 // pred_region
          %s310 = sand.u32 %s48, 1
          %s311 = scalar_lea.sflag [#allocation6], %s310
          %s312 = sand.u32 %s48, 1
          %s313 = smul.addr %s312, 16
          %s314 = scalar_lea.vmem [#allocation5], %s313
          %316 = vsyncadd %s311, 0
          %s317 = smul.addr %s33, 2
          %s318 = smul.addr %s317, 8
          %s319 = scalar_lea.hbm %s0, %s318
          %s320 = sshll.u32 %s319, 4
          %s321 = int_to_ptr.hbm [resolvable:$true] %s320
          %s322 = sshll.u32 %s314, 4
          %s323 = int_to_ptr.vmem [resolvable:$true] %s322
          %328 = dma.hbm_to_vmem [thread:$0]  %s321, 256, %s323, %s311, 128, 128, 8
        $region48: #{tpu_custom_call.1} parent=43 // pred_fallthru
          _
      $region44: #{tpu_custom_call.1} parent=5 // pred_fallthru
        _
      %p329 = scmp.le.s32.totalorder 1, %s26
      %p330 = scmp.lt.s32.totalorder %s26, 3
      %p331 = pnand %p329, %p330
      %p332 = pneg %p331
      // Predicated region
      $region49: #{tpu_custom_call.1} parent=5 // pred_check
        _
      $region50: #{tpu_custom_call.1} parent=5 // pred_check_branch
        %334 = sbr.rel (%p331) target = $region52
      $region51: #{tpu_custom_call.1} parent=5 // pred_region
        %s335 = ssub.s32 %s26, 1
        %s336 = sand.u32 %s51, 1
        %s337 = scalar_lea.sflag [#allocation6], %s336
        %s338 = sand.u32 %s51, 1
        %s339 = smul.addr %s338, 16
        %s340 = scalar_lea.vmem [#allocation5], %s339
        // Predicated region
        $region53: #{tpu_custom_call.1} parent=51 // pred_check
          %p341 = pneg %p64
        $region54: #{tpu_custom_call.1} parent=51 // pred_check_branch
          %343 = sbr.rel (%p341) target = $region56
        $region55: #{tpu_custom_call.1} parent=51 // pred_region
          %345 = dma.done %s337, 256
        $region56: #{tpu_custom_call.1} parent=51 // pred_fallthru
          _
        %s346 = sand.u32 %s51, 1
        %s347 = scalar_lea.sflag [#allocation6], %s346
        %s348 = sand.u32 %s51, 1
        %s349 = smul.addr %s348, 16
        %s350 = scalar_lea.vmem [#allocation5], %s349
        %p351 = pneg %p64
        %p352 = pneg %p61
        %p353 = pneg %p85
        %p354 = pneg %p82
        %p355 = pneg %p106
        %p356 = pneg %p103
        %p357 = pneg %p127
        %p358 = pneg %p124
        %p359 = pneg %p148
        %p360 = pneg %p145
        %p361 = pneg %p169
        %p362 = pneg %p166
        %p363 = pneg %p190
        %p364 = pneg %p187
        %p365 = pneg %p211
        %p366 = pneg %p208
        %p367 = pneg %p239
        %p368 = pneg %p236
        %s369 = sand.u32 %s226, 1
        %s370 = scalar_lea.sflag [#allocation7], %s369
        %s371 = sand.u32 %s226, 1
        %s372 = smul.addr %s371, 16
        %s373 = scalar_lea.vmem [#allocation8], %s372
        %p374 = pneg %p267
        %p375 = pneg %p264
        %s376 = sand.u32 %s254, 1
        %s377 = scalar_lea.sflag [#allocation10], %s376
        %s378 = sand.u32 %s254, 1
        %s379 = smul.addr %s378, 64
        %s380 = scalar_lea.vmem [#allocation9], %s379
        %s381 = smul.u32 8, %s36
        %v382 = vld [vmem:[%s340] sm:$0xff]
        %v383 = vld [vmem:[%s340 + $0x8] sm:$0xff]
        %p384 = scmp.eq.s32.totalorder %s36, 0
        // Predicated region
        $region57: #{tpu_custom_call.1} parent=51 // pred_check
          %p385 = pneg %p384
        $region58: #{tpu_custom_call.1} parent=51 // pred_check_branch
          %387 = sbr.rel (%p385) target = $region60
        $region59: #{tpu_custom_call.1} parent=51 // pred_region
          %v388 = vld [vmem:[%s3] sm:$0x3]
          %v389 = vld [vmem:[%s4] sm:$0x3]
          %391 = vset.pattern.permute.xlu0 0
          %392 = vperm.xlu0 %391, %v389
          %v393 = vpop.permute.xlu0 %392
          %vm395 = vcmask 130048
          %v397 = vsel %vm395, %v388, 0
          %399 = vmatpush.msra.mxu0 0.0
          %400 = vmatpush.msra.mxu0 0.0
          %401 = vmatpush.msra.mxu0 0.0
          %402 = vmatpush.msra.mxu0 0.0
          %403 = vmatpush.msra.mxu0 0.0
          %404 = vmatpush.msra.mxu0 0.0
          %405 = vmatpush.msra.mxu0 0.0
          %406 = vmatpush.msra.mxu0 0.0
          %407 = vmatpush.msra.mxu0 0.0
          %408 = vmatpush.msra.mxu0 0.0
          %409 = vmatpush.msra.mxu0 0.0
          %410 = vmatpush.msra.mxu0 0.0
          %411 = vmatpush.msra.mxu0 0.0
          %412 = vmatpush.msra.mxu0 0.0
          %413 = vmatpush.msra.mxu0 %v383
          %414 = vmatpush.msra.mxu0 %v382
          %415 = vmatmul.f32.gmra.mxu0 %v397
          %v416 = vpop.f32.mrf.mxu0
          %v417 = vadd.f32 %v393, %v416
          %418 = vdwg.mxu0
          %vm419 = vcmask 517120
          %420 = vst.msk [vmem:[#allocation2] sm:$0x3] %vm419, %v417
          %v421 = vld [vmem:[%s5] sm:$0xff]
          %v422 = vld [vmem:[%s5 + $0x8] sm:$0xff]
          %v423 = vld [vmem:[%s6] sm:$0xff]
          %v424 = vld [vmem:[%s6 + $0x8] sm:$0xff]
          %426 = vset.pattern.permute.xlu0 0
          %427 = vperm.xlu0 %426, %v423
          %v428 = vpop.permute.xlu0 %427
          %431 = vset.pattern.permute.xlu0 0
          %432 = vperm.xlu0 %431, %v424
          %v433 = vpop.permute.xlu0 %432
          %v436 = vsel %vm395, %v421, 0
          %v439 = vsel %vm395, %v422, 0
          %441 = vmatpush.msra.mxu0 0.0
          %442 = vmatpush.msra.mxu0 0.0
          %443 = vmatpush.msra.mxu0 0.0
          %444 = vmatpush.msra.mxu0 0.0
          %445 = vmatpush.msra.mxu0 0.0
          %446 = vmatpush.msra.mxu0 0.0
          %447 = vmatpush.msra.mxu0 0.0
          %448 = vmatpush.msra.mxu0 0.0
          %449 = vmatpush.msra.mxu0 0.0
          %450 = vmatpush.msra.mxu0 0.0
          %451 = vmatpush.msra.mxu0 0.0
          %452 = vmatpush.msra.mxu0 0.0
          %453 = vmatpush.msra.mxu0 0.0
          %454 = vmatpush.msra.mxu0 0.0
          %455 = vmatpush.msra.mxu0 %v383
          %456 = vmatpush.msra.mxu0 %v382
          %457 = vmatmul.f32.gmra.mxu0 %v436
          %v458 = vpop.f32.mrf.mxu0
          %v459 = vadd.f32 %v428, %v458
          %460 = vmatmul.f32.gmra.mxu0 %v439
          %v461 = vpop.f32.mrf.mxu0
          %v462 = vadd.f32 %v433, %v461
          %463 = vdwg.mxu0
          %vm464 = vcmask 523264
          %465 = vst.msk [vmem:[#allocation3] sm:$0xff] %vm464, %v459
          %466 = vst.msk [vmem:[#allocation3 + $0x8] sm:$0xff] %vm464, %v462
        $region60: #{tpu_custom_call.1} parent=51 // pred_fallthru
          _
        %v467 = vld [vmem:[%s1] sm:$0x3]
        %v468 = vld [vmem:[%s2] sm:$0x3]
        %470 = vset.pattern.permute.xlu0 0
        %471 = vperm.xlu0 %470, %v468
        %v472 = vpop.permute.xlu0 %471
        %vm474 = vcmask 130048
        %v476 = vsel %vm474, %v467, 0
        %478 = vmatpush.msra.mxu0 0.0
        %479 = vmatpush.msra.mxu0 0.0
        %480 = vmatpush.msra.mxu0 0.0
        %481 = vmatpush.msra.mxu0 0.0
        %482 = vmatpush.msra.mxu0 0.0
        %483 = vmatpush.msra.mxu0 0.0
        %484 = vmatpush.msra.mxu0 0.0
        %485 = vmatpush.msra.mxu0 0.0
        %486 = vmatpush.msra.mxu0 0.0
        %487 = vmatpush.msra.mxu0 0.0
        %488 = vmatpush.msra.mxu0 0.0
        %489 = vmatpush.msra.mxu0 0.0
        %490 = vmatpush.msra.mxu0 0.0
        %491 = vmatpush.msra.mxu0 0.0
        %492 = vmatpush.msra.mxu0 %v383
        %493 = vmatpush.msra.mxu0 %v382
        %494 = vmatmul.f32.gmra.mxu0 %v476
        %v495 = vpop.f32.mrf.mxu0
        %v496 = vadd.f32 %v472, %v495
        %497 = vdwg.mxu0
        %v498 = vld [vmem:[#allocation2] sm:$0x3]
        %499 = vxpose.xlu0.b32.start [1/16] %v496, 128
        %500 = vxpose.xlu0.b32.cont [2/16] 0.0, 128
        %501 = vxpose.xlu0.b32.cont [3/16] 0.0, 128
        %502 = vxpose.xlu0.b32.cont [4/16] 0.0, 128
        %503 = vxpose.xlu0.b32.cont [5/16] 0.0, 128
        %504 = vxpose.xlu0.b32.cont [6/16] 0.0, 128
        %505 = vxpose.xlu0.b32.cont [7/16] 0.0, 128
        %506 = vxpose.xlu0.b32.cont [8/16] 0.0, 128
        %507 = vxpose.xlu0.b32.cont [9/16] 0.0, 128
        %508 = vxpose.xlu0.b32.cont [10/16] 0.0, 128
        %509 = vxpose.xlu0.b32.cont [11/16] 0.0, 128
        %510 = vxpose.xlu0.b32.cont [12/16] 0.0, 128
        %511 = vxpose.xlu0.b32.cont [13/16] 0.0, 128
        %512 = vxpose.xlu0.b32.cont [14/16] 0.0, 128
        %513 = vxpose.xlu0.b32.cont [15/16] 0.0, 128
        %514 = vxpose.xlu0.b32.end [16/16] 0.0, 128
        %v515 = vpop.trf.xlu0
        %v516 = vpop.trf.xlu0
        %v517 = vpop.trf.xlu0
        %v518 = vpop.trf.xlu0
        %v519 = vpop.trf.xlu0
        %v520 = vpop.trf.xlu0
        %v521 = vpop.trf.xlu0
        %v522 = vpop.trf.xlu0
        %v523 = vpop.trf.xlu0
        %v524 = vpop.trf.xlu0
        %v525 = vpop.trf.xlu0
        %v526 = vpop.trf.xlu0
        %v527 = vpop.trf.xlu0
        %v528 = vpop.trf.xlu0
        %v529 = vpop.trf.xlu0
        %v530 = vpop.trf.xlu0
        %vm531 = vcmask 15360
        %v533 = vsel %vm531, %v515, 0
        %v536 = vsel %vm531, %v516, 0
        %v539 = vsel %vm531, %v517, 0
        %v542 = vsel %vm531, %v518, 0
        %v545 = vsel %vm531, %v519, 0
        %v548 = vsel %vm531, %v520, 0
        %v551 = vsel %vm531, %v521, 0
        %v554 = vsel %vm531, %v522, 0
        %vm556 = vcmask 1041408
        %v558 = vsel %vm556, %v498, 0
        %560 = vmatpush.msra.mxu0 0.0
        %561 = vmatpush.msra.mxu0 0.0
        %562 = vmatpush.msra.mxu0 0.0
        %563 = vmatpush.msra.mxu0 0.0
        %564 = vmatpush.msra.mxu0 0.0
        %565 = vmatpush.msra.mxu0 0.0
        %566 = vmatpush.msra.mxu0 0.0
        %567 = vmatpush.msra.mxu0 0.0
        %568 = vmatpush.msra.mxu0 0.0
        %569 = vmatpush.msra.mxu0 0.0
        %570 = vmatpush.msra.mxu0 0.0
        %571 = vmatpush.msra.mxu0 0.0
        %572 = vmatpush.msra.mxu0 0.0
        %573 = vmatpush.msra.mxu0 0.0
        %574 = vmatpush.msra.mxu0 0.0
        %575 = vmatpush.msra.mxu0 %v558
        %576 = vmatmul.f32.gmra.mxu0 %v533
        %v577 = vpop.f32.mrf.mxu0
        %v578 = vadd.f32 0.0, %v577
        %579 = vmatmul.f32.gmra.mxu0 %v536
        %v580 = vpop.f32.mrf.mxu0
        %v581 = vadd.f32 0.0, %v580
        %582 = vmatmul.f32.gmra.mxu0 %v539
        %v583 = vpop.f32.mrf.mxu0
        %v584 = vadd.f32 0.0, %v583
        %585 = vmatmul.f32.gmra.mxu0 %v542
        %v586 = vpop.f32.mrf.mxu0
        %v587 = vadd.f32 0.0, %v586
        %588 = vmatmul.f32.gmra.mxu0 %v545
        %v589 = vpop.f32.mrf.mxu0
        %v590 = vadd.f32 0.0, %v589
        %591 = vmatmul.f32.gmra.mxu0 %v548
        %v592 = vpop.f32.mrf.mxu0
        %v593 = vadd.f32 0.0, %v592
        %594 = vmatmul.f32.gmra.mxu0 %v551
        %v595 = vpop.f32.mrf.mxu0
        %v596 = vadd.f32 0.0, %v595
        %597 = vmatmul.f32.gmra.mxu0 %v554
        %v598 = vpop.f32.mrf.mxu0
        %v599 = vadd.f32 0.0, %v598
        %600 = vdwg.mxu0
        %vm601 = vcmask 523264
        %v602 = vsel %vm601, %v578, -inf
        %603 = vmax.xlane.f32.xlu0 %v602
        %v604 = vpop.xlane.xlu0 %603
        %v605 = vsel %vm601, %v581, -inf
        %606 = vmax.xlane.f32.xlu0 %v605
        %v607 = vpop.xlane.xlu0 %606
        %v608 = vsel %vm601, %v584, -inf
        %609 = vmax.xlane.f32.xlu0 %v608
        %v610 = vpop.xlane.xlu0 %609
        %v611 = vsel %vm601, %v587, -inf
        %612 = vmax.xlane.f32.xlu0 %v611
        %v613 = vpop.xlane.xlu0 %612
        %v614 = vsel %vm601, %v590, -inf
        %615 = vmax.xlane.f32.xlu0 %v614
        %v616 = vpop.xlane.xlu0 %615
        %v617 = vsel %vm601, %v593, -inf
        %618 = vmax.xlane.f32.xlu0 %v617
        %v619 = vpop.xlane.xlu0 %618
        %v620 = vsel %vm601, %v596, -inf
        %621 = vmax.xlane.f32.xlu0 %v620
        %v622 = vpop.xlane.xlu0 %621
        %v623 = vsel %vm601, %v599, -inf
        %624 = vmax.xlane.f32.xlu0 %v623
        %v625 = vpop.xlane.xlu0 %624
        %v626 = vsub.f32 %v578, %v604
        %v627 = vsub.f32 %v581, %v607
        %v628 = vsub.f32 %v584, %v610
        %v629 = vsub.f32 %v587, %v613
        %v630 = vsub.f32 %v590, %v616
        %v631 = vsub.f32 %v593, %v619
        %v632 = vsub.f32 %v596, %v622
        %v633 = vsub.f32 %v599, %v625
        %v634 = vmul.f32 %v626, 1.442695
        %v635 = vpow.pop %v634
        %v636 = vmul.f32 %v627, 1.442695
        %v637 = vpow.pop %v636
        %v638 = vmul.f32 %v628, 1.442695
        %v639 = vpow.pop %v638
        %v640 = vmul.f32 %v629, 1.442695
        %v641 = vpow.pop %v640
        %v642 = vmul.f32 %v630, 1.442695
        %v643 = vpow.pop %v642
        %v644 = vmul.f32 %v631, 1.442695
        %v645 = vpow.pop %v644
        %v646 = vmul.f32 %v632, 1.442695
        %v647 = vpow.pop %v646
        %v648 = vmul.f32 %v633, 1.442695
        %v649 = vpow.pop %v648
        %v650 = vsel %vm601, %v635, 0.0
        %651 = vadd.xlane.f32.xlu0 %v650
        %v652 = vpop.xlane.xlu0 %651
        %v653 = vsel %vm601, %v637, 0.0
        %654 = vadd.xlane.f32.xlu0 %v653
        %v655 = vpop.xlane.xlu0 %654
        %v656 = vsel %vm601, %v639, 0.0
        %657 = vadd.xlane.f32.xlu0 %v656
        %v658 = vpop.xlane.xlu0 %657
        %v659 = vsel %vm601, %v641, 0.0
        %660 = vadd.xlane.f32.xlu0 %v659
        %v661 = vpop.xlane.xlu0 %660
        %v662 = vsel %vm601, %v643, 0.0
        %663 = vadd.xlane.f32.xlu0 %v662
        %v664 = vpop.xlane.xlu0 %663
        %v665 = vsel %vm601, %v645, 0.0
        %666 = vadd.xlane.f32.xlu0 %v665
        %v667 = vpop.xlane.xlu0 %666
        %v668 = vsel %vm601, %v647, 0.0
        %669 = vadd.xlane.f32.xlu0 %v668
        %v670 = vpop.xlane.xlu0 %669
        %v671 = vsel %vm601, %v649, 0.0
        %672 = vadd.xlane.f32.xlu0 %v671
        %v673 = vpop.xlane.xlu0 %672
        %v674 = vrcp.pop %v652
        %v675 = vrcp.pop %v655
        %v676 = vrcp.pop %v658
        %v677 = vrcp.pop %v661
        %v678 = vrcp.pop %v664
        %v679 = vrcp.pop %v667
        %v680 = vrcp.pop %v670
        %v681 = vrcp.pop %v673
        %v682 = vmul.f32 %v652, %v674
        %v683 = vmul.f32 %v655, %v675
        %v684 = vmul.f32 %v658, %v676
        %v685 = vmul.f32 %v661, %v677
        %v686 = vmul.f32 %v664, %v678
        %v687 = vmul.f32 %v667, %v679
        %v688 = vmul.f32 %v670, %v680
        %v689 = vmul.f32 %v673, %v681
        %v690 = vsub.f32 2.0, %v682
        %v691 = vsub.f32 2.0, %v683
        %v692 = vsub.f32 2.0, %v684
        %v693 = vsub.f32 2.0, %v685
        %v694 = vsub.f32 2.0, %v686
        %v695 = vsub.f32 2.0, %v687
        %v696 = vsub.f32 2.0, %v688
        %v697 = vsub.f32 2.0, %v689
        %v698 = vmul.f32 %v674, %v690
        %v699 = vmul.f32 %v675, %v691
        %v700 = vmul.f32 %v676, %v692
        %v701 = vmul.f32 %v677, %v693
        %v702 = vmul.f32 %v678, %v694
        %v703 = vmul.f32 %v679, %v695
        %v704 = vmul.f32 %v680, %v696
        %v705 = vmul.f32 %v681, %v697
        %v706 = vmul.f32 %v635, %v698
        %v707 = vmul.f32 %v637, %v699
        %v708 = vmul.f32 %v639, %v700
        %v709 = vmul.f32 %v641, %v701
        %v710 = vmul.f32 %v643, %v702
        %v711 = vmul.f32 %v645, %v703
        %v712 = vmul.f32 %v647, %v704
        %v713 = vmul.f32 %v649, %v705
        %714 = vst.msk [vmem:[%s380] sm:$0xff] %vm601, %v706
        %715 = vst.msk [vmem:[%s380 + $0x8] sm:$0xff] %vm601, %v707
        %716 = vst.msk [vmem:[%s380 + $0x10] sm:$0xff] %vm601, %v708
        %717 = vst.msk [vmem:[%s380 + $0x18] sm:$0xff] %vm601, %v709
        %718 = vst.msk [vmem:[%s380 + $0x20] sm:$0xff] %vm601, %v710
        %719 = vst.msk [vmem:[%s380 + $0x28] sm:$0xff] %vm601, %v711
        %720 = vst.msk [vmem:[%s380 + $0x30] sm:$0xff] %vm601, %v712
        %721 = vst.msk [vmem:[%s380 + $0x38] sm:$0xff] %vm601, %v713
        %v722 = vld [vmem:[#allocation3] sm:$0xff]
        %v723 = vld [vmem:[#allocation3 + $0x8] sm:$0xff]
        %v725 = vsel %vm601, %v722, 0
        %v728 = vsel %vm601, %v723, 0
        %v731 = vsel %vm601, %v706, 0
        %v734 = vsel %vm601, %v707, 0
        %v737 = vsel %vm601, %v708, 0
        %v740 = vsel %vm601, %v709, 0
        %v743 = vsel %vm601, %v710, 0
        %v746 = vsel %vm601, %v711, 0
        %v749 = vsel %vm601, %v712, 0
        %v752 = vsel %vm601, %v713, 0
        %754 = vmatpush.xpose.msra.mxu0 0.0
        %755 = vmatpush.xpose.msra.mxu0 0.0
        %756 = vmatpush.xpose.msra.mxu0 0.0
        %757 = vmatpush.xpose.msra.mxu0 0.0
        %758 = vmatpush.xpose.msra.mxu0 0.0
        %759 = vmatpush.xpose.msra.mxu0 0.0
        %760 = vmatpush.xpose.msra.mxu0 0.0
        %761 = vmatpush.xpose.msra.mxu0 0.0
        %762 = vmatpush.xpose.msra.mxu0 %v752
        %763 = vmatpush.xpose.msra.mxu0 %v749
        %764 = vmatpush.xpose.msra.mxu0 %v746
        %765 = vmatpush.xpose.msra.mxu0 %v743
        %766 = vmatpush.xpose.msra.mxu0 %v740
        %767 = vmatpush.xpose.msra.mxu0 %v737
        %768 = vmatpush.xpose.msra.mxu0 %v734
        %769 = vmatpush.xpose.msra.mxu0 %v731
        %770 = vmatmul.f32.gmra.mxu0 %v725
        %v771 = vpop.f32.mrf.mxu0
        %v772 = vadd.f32 0.0, %v771
        %773 = vmatmul.f32.gmra.mxu0 %v728
        %v774 = vpop.f32.mrf.mxu0
        %v775 = vadd.f32 0.0, %v774
        %776 = vdwg.mxu0
        %s777 = sld [smem:[#allocation4]]
        %v778 = vstv %s777
        %v779 = vmul.f32 %v778, %v772
        %v780 = vmul.f32 %v778, %v775
        %v781 = vadd.f32 %v779, %v382
        %v782 = vadd.f32 %v780, %v383
        %783 = vst.msk [vmem:[%s373] sm:$0xff] %vm601, %v781
        %784 = vst.msk [vmem:[%s373 + $0x8] sm:$0xff] %vm601, %v782
        %s785 = sand.u32 %s226, 1
        %s786 = scalar_lea.sflag [#allocation7], %s785
        %s787 = sand.u32 %s226, 1
        %s788 = smul.addr %s787, 16
        %s789 = scalar_lea.vmem [#allocation8], %s788
        %s790 = sand.u32 %s254, 1
        %s791 = scalar_lea.sflag [#allocation10], %s790
        %s792 = sand.u32 %s254, 1
        %s793 = smul.addr %s792, 64
        %s794 = scalar_lea.vmem [#allocation9], %s793
        // Predicated region
        $region61: #{tpu_custom_call.1} parent=51 // pred_check
          %p795 = pneg %p236
        $region62: #{tpu_custom_call.1} parent=51 // pred_check_branch
          %797 = sbr.rel (%p795) target = $region64
        $region63: #{tpu_custom_call.1} parent=51 // pred_region
          %799 = vsyncadd %s786, 0
          %s800 = smul.addr %s35, 2
          %s801 = sadd.s32 %s36, %s800
          %s802 = smul.addr %s801, 8
          %s803 = scalar_lea.hbm %s8, %s802
          %s804 = sshll.u32 %s789, 4
          %s805 = int_to_ptr.vmem [resolvable:$true] %s804
          %s806 = sshll.u32 %s803, 4
          %s807 = int_to_ptr.hbm [resolvable:$true] %s806
          %812 = dma.vmem_to_hbm [thread:$0]  %s805, 256, %s807, %s786, 128, 128, 8
        $region64: #{tpu_custom_call.1} parent=51 // pred_fallthru
          _
        // Predicated region
        $region65: #{tpu_custom_call.1} parent=51 // pred_check
          %p813 = pneg %p264
        $region66: #{tpu_custom_call.1} parent=51 // pred_check_branch
          %815 = sbr.rel (%p813) target = $region68
        $region67: #{tpu_custom_call.1} parent=51 // pred_region
          %s816 = smul.u32 8, %s36
          %818 = vsyncadd %s791, 0
          %s819 = smul.addr %s35, 8
          %s820 = sadd.s32 %s816, %s819
          %s821 = smul.addr %s820, 8
          %s822 = scalar_lea.hbm %s9, %s821
          %s823 = sshll.u32 %s794, 4
          %s824 = int_to_ptr.vmem [resolvable:$true] %s823
          %s825 = sshll.u32 %s822, 4
          %s826 = int_to_ptr.hbm [resolvable:$true] %s825
          %831 = dma.vmem_to_hbm [thread:$0]  %s824, 1024, %s826, %s791, 128, 128, 8
        $region68: #{tpu_custom_call.1} parent=51 // pred_fallthru
          _
      $region52: #{tpu_custom_call.1} parent=5 // pred_fallthru
        _
      %p832 = scmp.le.s32.totalorder 2, %s26
      // Predicated region
      $region69: #{tpu_custom_call.1} parent=5 // pred_check
        %p833 = pneg %p832
      $region70: #{tpu_custom_call.1} parent=5 // pred_check_branch
        %835 = sbr.rel (%p833) target = $region72
      $region71: #{tpu_custom_call.1} parent=5 // pred_region
        %s836 = ssub.s32 %s26, 2
        // Predicated region
        $region73: #{tpu_custom_call.1} parent=71 // pred_check
          %p837 = pneg %p242
        $region74: #{tpu_custom_call.1} parent=71 // pred_check_branch
          %839 = sbr.rel (%p837) target = $region76
        $region75: #{tpu_custom_call.1} parent=71 // pred_region
          %s840 = sand.u32 %s227, 1
          %s841 = scalar_lea.sflag [#allocation7], %s840
          %s842 = sand.u32 %s227, 1
          %s843 = smul.addr %s842, 16
          %s844 = scalar_lea.vmem [#allocation8], %s843
          %846 = dma.done %s841, 256
        $region76: #{tpu_custom_call.1} parent=71 // pred_fallthru
          _
        // Predicated region
        $region77: #{tpu_custom_call.1} parent=71 // pred_check
          %p847 = pneg %p270
        $region78: #{tpu_custom_call.1} parent=71 // pred_check_branch
          %849 = sbr.rel (%p847) target = $region80
        $region79: #{tpu_custom_call.1} parent=71 // pred_region
          %s850 = sand.u32 %s255, 1
          %s851 = scalar_lea.sflag [#allocation10], %s850
          %s852 = sand.u32 %s255, 1
          %s853 = smul.addr %s852, 64
          %s854 = scalar_lea.vmem [#allocation9], %s853
          %856 = dma.done %s851, 1024
        $region80: #{tpu_custom_call.1} parent=71 // pred_fallthru
          _
      $region72: #{tpu_custom_call.1} parent=5 // pred_fallthru
        _
    $region6: #{tpu_custom_call.1} parent=1 // loop_footer
      %s30 = sadd.s32 1, %s26
    $region7: #{tpu_custom_call.1} parent=1 // loop_footer_branch
      %25 = sbr.rel target = $region3
    $region8: #{tpu_custom_call.1} parent=1 // loop_exit
      _
    %857 = vsyncpa [#allocation6], 1
    %s858 = scalar_lea.sflag [#allocation6], 1
    %859 = vsyncpa %s858, 1
    %860 = vsyncpa [#allocation7], 1
    %s861 = scalar_lea.sflag [#allocation7], 1
    %862 = vsyncpa %s861, 1
    %863 = vsyncpa [#allocation10], 1
    %s864 = scalar_lea.sflag [#allocation10], 1
    %865 = vsyncpa %s864, 1

</llo_original>
